<compile_context>
chip_gen: v6e
topology: v6e:2x2x1
jax: 0.10.0
libtpu: 0.0.40
codegen_flags: <defaults>
</compile_context>

<pallas_src>
import functools

import numpy as np
import jax
import jax.numpy as jnp
from jax import lax
from jax.experimental import pallas as pl
from jax.experimental.pallas import tpu as pltpu

L2_REG = 0.02
ANGLE_BOUND = 1.0


def _round_up(x, m):
    return ((x + m - 1) // m) * m


def _angular_loss_kernel(a_ref, p_ref, pfull_ref, out_ref, *,
                         n_valid, tn, angle_bound, l2_reg):
    # a_ref, p_ref:  (tn, E_pad)  row tile of anchors / positives
    # pfull_ref:     (n_pad, E_pad) full positives = the pool of negatives
    a = a_ref[...].astype(jnp.float32)
    p = p_ref[...].astype(jnp.float32)
    pf = pfull_ref[...].astype(jnp.float32)

    n_pad = pf.shape[0]
    row0 = pl.program_id(0) * tn

    # MXU: scores of (a_i + p_i) against every candidate negative p_k.
    s = lax.dot_general(a + p, pf,
                        dimension_numbers=(((1,), (1,)), ((), ())),
                        preferred_element_type=jnp.float32)          # (tn, n_pad)
    # Per-anchor bias a_i . p_i (cheap rowwise reduce, no (n,m,E) temporary).
    d = jnp.sum(a * p, axis=-1, keepdims=True)                       # (tn, 1)

    x = (4.0 * angle_bound) * s - (2.0 * (1.0 + angle_bound)) * d    # (tn, n_pad)

    # Mask out the anchor's own pair (diagonal) and padded columns.
    rows = row0 + lax.broadcasted_iota(jnp.int32, (tn, n_pad), 0)
    cols = lax.broadcasted_iota(jnp.int32, (tn, n_pad), 1)
    neg_mask = (cols < n_valid) & (cols != rows)
    x = jnp.where(neg_mask, x, jnp.float32(-1e30))

    # Stable log-sum-exp epilogue (exp/log on the EUP slot).
    t = jnp.max(x, axis=-1, keepdims=True)                           # (tn, 1)
    ssum = jnp.sum(jnp.exp(x - t), axis=-1, keepdims=True)           # (tn, 1)
    per_row = t + jnp.log(jnp.exp(-t) + ssum)                        # (tn, 1)

    row_ids = row0 + lax.broadcasted_iota(jnp.int32, (tn, 1), 0)
    per_row = jnp.where(row_ids < n_valid, per_row, jnp.float32(0.0))

    ang_sum = jnp.sum(per_row, keepdims=True)                        # (1, 1)
    # Padded rows are zero, so they contribute nothing to the L2 term.
    l2_sum = jnp.sum(a * a + p * p, keepdims=True)                   # (1, 1)

    tile = (ang_sum + jnp.float32(l2_reg) * l2_sum) * jnp.float32(1.0 / n_valid)

    @pl.when(pl.program_id(0) == 0)
    def _():
        out_ref[...] = jnp.zeros_like(out_ref)

    out_ref[...] += tile


def angular_loss_pallas(anchors, positives, *, angle_bound=ANGLE_BOUND,
                        l2_reg=L2_REG):
    """anchors, positives: (n, E).  Negatives of anchor i are positives[k != i]."""
    anchors = jnp.asarray(anchors)
    positives = jnp.asarray(positives)
    n, e = anchors.shape

    # Lane-dense / (8,128)-aligned padding.
    e_pad = _round_up(e, 128)
    tn = 128 if n > 128 else _round_up(n, 8)
    n_pad = _round_up(n, tn)

    a = jnp.pad(anchors.astype(jnp.float32),
                ((0, n_pad - n), (0, e_pad - e)))
    p = jnp.pad(positives.astype(jnp.float32),
                ((0, n_pad - n), (0, e_pad - e)))

    grid = (n_pad // tn,)

    # Per-step VMEM (double-buffered tiles + full positives) stays tiny after the
    # restructure; request a matching scoped-VMEM limit (clamped for v7x's 64 MiB).
    vmem_need = 4 * (2 * 2 * tn * e_pad + 2 * n_pad * e_pad) + (2 << 20)
    vmem_limit = int(min(max(vmem_need, 16 << 20), 48 << 20))

    kernel = functools.partial(
        _angular_loss_kernel,
        n_valid=n, tn=tn,
        angle_bound=float(angle_bound), l2_reg=float(l2_reg))

    out = pl.pallas_call(
        kernel,
        out_shape=jax.ShapeDtypeStruct((1, 1), jnp.float32),
        grid=grid,
        in_specs=[
            pl.BlockSpec((tn, e_pad), lambda i: (i, 0)),      # anchor row tile
            pl.BlockSpec((tn, e_pad), lambda i: (i, 0)),      # positive row tile
            pl.BlockSpec((n_pad, e_pad), lambda i: (0, 0)),   # full positives pool
        ],
        out_specs=pl.BlockSpec((1, 1), lambda i: (0, 0)),     # resident accumulator
        compiler_params=pltpu.CompilerParams(
            dimension_semantics=("arbitrary",),
            vmem_limit_bytes=vmem_limit),
        cost_estimate=pl.CostEstimate(
            flops=2 * n_pad * n_pad * e_pad + 4 * n_pad * e_pad,
            transcendentals=2 * n_pad * n_pad,
            bytes_accessed=(3 * n_pad * e_pad) * 4 + 4),
    )(a, p, p)
    return out[0, 0]


def get_n_pairs(labels):
    """Host-side pair mining, identical semantics to the PyTorch module."""
    labels = np.asarray(labels)
    n_pairs = []
    for label in sorted(set(labels.tolist())):
        label_indices = np.where(labels == label)[0]
        if len(label_indices) < 2:
            continue
        anchor, positive = np.random.choice(label_indices, 2, replace=False)
        n_pairs.append([anchor, positive])
    n_pairs = np.array(n_pairs)
    n_negatives = []
    for i in range(len(n_pairs)):
        negative = np.concatenate([n_pairs[:i, 1], n_pairs[i + 1:, 1]])
        n_negatives.append(negative)
    n_negatives = np.array(n_negatives)
    return n_pairs.astype(np.int64), n_negatives.astype(np.int64)


def angular_loss_forward(embeddings, target, *, angle_bound=ANGLE_BOUND,
                         l2_reg=L2_REG):
    """Equivalent of AngularLoss.forward: returns (loss, 0, 0, 0).

    The explicit (n, n-1, E) negatives gather is skipped: the kernel derives
    the negatives from the positives pool (negatives[i] == positives[k != i]).
    """
    # TODO(synk): pair mining uses np.random.choice in a Python loop (as in the
    # reference module) and therefore stays on the host.
    n_pairs, _ = get_n_pairs(target)
    anchors = embeddings[n_pairs[:, 0]]
    positives = embeddings[n_pairs[:, 1]]
    loss = angular_loss_pallas(anchors, positives,
                               angle_bound=angle_bound, l2_reg=l2_reg)
    return (loss, 0, 0, 0)


def _reference_loss(anchors, positives, negatives, *, angle_bound=ANGLE_BOUND,
                    l2_reg=L2_REG):
    """Pure-JAX transcription of the PyTorch AngularLoss forward (explicit negatives)."""
    a = anchors.astype(jnp.float32)
    p = positives.astype(jnp.float32)
    neg = negatives.astype(jnp.float32)
    x = (4.0 * angle_bound) * jnp.einsum('ne,nme->nm', a + p, neg) \
        - (2.0 * (1.0 + angle_bound)) * jnp.sum(a * p, axis=-1, keepdims=True)
    t = jnp.max(x, axis=-1, keepdims=True)
    ang = jnp.mean(t[:, 0] + jnp.log(jnp.exp(-t[:, 0])
                                     + jnp.sum(jnp.exp(x - t), axis=-1)))
    l2 = jnp.sum(a * a + p * p) / a.shape[0]
    return ang + l2_reg * l2


if __name__ == "__main__":
    np.random.seed(0)
    key = jax.random.PRNGKey(0)

    batch = 8
    embed_dim = 32
    # 4 classes, 2 samples each -> n = 4 pairs, n-1 = 3 negatives per anchor.
    target = np.array([0, 0, 1, 1, 2, 2, 3, 3], dtype=np.int64)
    embeddings = jax.random.normal(key, (batch, embed_dim), dtype=jnp.float32)

    # Mine pairs once so kernel and reference see identical data.
    n_pairs, n_negatives = get_n_pairs(target)
    anchors = embeddings[n_pairs[:, 0]]        # (n, E)
    positives = embeddings[n_pairs[:, 1]]      # (n, E)
    negatives = embeddings[n_negatives]        # (n, n-1, E) -- reference only

    loss = angular_loss_pallas(anchors, positives,
                               angle_bound=ANGLE_BOUND, l2_reg=L2_REG)
    loss = jax.block_until_ready(loss)

    ref = _reference_loss(anchors, positives, negatives,
                          angle_bound=ANGLE_BOUND, l2_reg=L2_REG)
    ref = jax.block_until_ready(ref)
    np.testing.assert_allclose(np.array(loss), np.array(ref),
                               rtol=1e-5, atol=1e-5)

    # Exercise the full module-equivalent forward (tuple return).
    outputs = angular_loss_forward(embeddings, target)
    jax.block_until_ready(outputs[0])

    print("KERNEL_OK")
</pallas_src>

<mosaic_0001>
module attributes {stable_mosaic.version = 11 : i64} {
  func.func @_angular_loss_kernel(%arg0: i32, %arg1: memref<8x128xf32, #tpu.memory_space<vmem>>, %arg2: memref<8x128xf32, #tpu.memory_space<vmem>>, %arg3: memref<8x128xf32, #tpu.memory_space<vmem>>, %arg4: memref<1x1xf32, #tpu.memory_space<vmem>>) attributes {dimension_semantics = [#tpu.dimension_semantics<arbitrary>], iteration_bounds = array<i64: 1>, scalar_prefetch = 0 : i64, scratch_operands = 0 : i64, tpu.core_type = #tpu.core_type<tc>, window_params = [{transform_indices = @transform_0, window_bounds = array<i64: 8, 128>}, {transform_indices = @transform_1, window_bounds = array<i64: 8, 128>}, {pipeline_mode = #tpu.pipeline_mode<synchronous>, transform_indices = @transform_2, window_bounds = array<i64: 8, 128>}, {pipeline_mode = #tpu.pipeline_mode<synchronous>, transform_indices = @transform_3, window_bounds = array<i64: 1, 1>}]} {
    %c0 = arith.constant 0 : index
    %c0_0 = arith.constant 0 : index
    %0 = vector.load %arg1[%c0, %c0_0] : memref<8x128xf32, #tpu.memory_space<vmem>>, vector<8x128xf32>
    %c0_1 = arith.constant 0 : index
    %c0_2 = arith.constant 0 : index
    %1 = vector.load %arg2[%c0_1, %c0_2] : memref<8x128xf32, #tpu.memory_space<vmem>>, vector<8x128xf32>
    %c0_3 = arith.constant 0 : index
    %c0_4 = arith.constant 0 : index
    %2 = vector.load %arg3[%c0_3, %c0_4] : memref<8x128xf32, #tpu.memory_space<vmem>>, vector<8x128xf32>
    %c8_i32 = arith.constant 8 : i32
    %3 = arith.muli %arg0, %c8_i32 : i32
    %4 = arith.addf %0, %1 : vector<8x128xf32>
    %cst = arith.constant dense<0.000000e+00> : vector<8x8xf32>
    %5 = tpu.matmul %4, %2, %cst {dimension_numbers = #tpu.dot_dimension_numbers<[1], [1], [0], [0], [0, 0, 1, 0], [], []>} : vector<8x128xf32>, vector<8x128xf32>, vector<8x8xf32> -> vector<8x8xf32>
    %6 = arith.mulf %0, %1 : vector<8x128xf32>
    %cst_5 = arith.constant dense<0.000000e+00> : vector<8xf32>
    %7 = vector.multi_reduction <add>, %6, %cst_5 [1] : vector<8x128xf32> to vector<8xf32>
    %8 = vector.shape_cast %7 : vector<8xf32> to vector<8x1xf32>
    %cst_6 = arith.constant 4.000000e+00 : f32
    %9 = vector.broadcast %cst_6 : f32 to vector<8x8xf32>
    %10 = arith.mulf %9, %5 : vector<8x8xf32>
    %cst_7 = arith.constant 4.000000e+00 : f32
    %11 = vector.broadcast %cst_7 : f32 to vector<8x1xf32>
    %12 = arith.mulf %11, %8 : vector<8x1xf32>
    %13 = vector.broadcast %12 : vector<8x1xf32> to vector<8x8xf32>
    %14 = arith.subf %10, %13 : vector<8x8xf32>
    %15 = tpu.iota {dimensions = array<i32: 0>} : vector<8x8xi32>
    %16 = vector.broadcast %3 : i32 to vector<8x8xi32>
    %17 = arith.addi %16, %15 : vector<8x8xi32>
    %18 = tpu.iota {dimensions = array<i32: 1>} : vector<8x8xi32>
    %c4_i32 = arith.constant 4 : i32
    %19 = vector.broadcast %c4_i32 : i32 to vector<8x8xi32>
    %20 = arith.cmpi slt, %18, %19 : vector<8x8xi32>
    %21 = arith.cmpi ne, %18, %17 : vector<8x8xi32>
    %22 = arith.andi %20, %21 : vector<8x8xi1>
    %cst_8 = arith.constant -1.000000e+30 : f32
    %23 = vector.broadcast %cst_8 : f32 to vector<8x8xf32>
    %24 = arith.select %22, %14, %23 : vector<8x8xi1>, vector<8x8xf32>
    %cst_9 = arith.constant dense<0xFF800000> : vector<8xf32>
    %25 = vector.multi_reduction <maximumf>, %24, %cst_9 [1] : vector<8x8xf32> to vector<8xf32>
    %26 = vector.shape_cast %25 : vector<8xf32> to vector<8x1xf32>
    %27 = vector.broadcast %26 : vector<8x1xf32> to vector<8x8xf32>
    %28 = arith.subf %24, %27 : vector<8x8xf32>
    %29 = math.exp %28 : vector<8x8xf32>
    %cst_10 = arith.constant dense<0.000000e+00> : vector<8xf32>
    %30 = vector.multi_reduction <add>, %29, %cst_10 [1] : vector<8x8xf32> to vector<8xf32>
    %31 = vector.shape_cast %30 : vector<8xf32> to vector<8x1xf32>
    %cst_11 = arith.constant 0.000000e+00 : f32
    %32 = vector.broadcast %cst_11 : f32 to vector<8x1xf32>
    %33 = arith.subf %32, %26 : vector<8x1xf32>
    %34 = math.exp %33 : vector<8x1xf32>
    %35 = arith.addf %34, %31 : vector<8x1xf32>
    %36 = math.log %35 : vector<8x1xf32>
    %37 = arith.addf %26, %36 : vector<8x1xf32>
    %38 = tpu.iota {dimensions = array<i32: 0>} : vector<8x1xi32>
    %39 = vector.broadcast %3 : i32 to vector<8x1xi32>
    %40 = arith.addi %39, %38 : vector<8x1xi32>
    %c4_i32_12 = arith.constant 4 : i32
    %41 = vector.broadcast %c4_i32_12 : i32 to vector<8x1xi32>
    %42 = arith.cmpi slt, %40, %41 : vector<8x1xi32>
    %cst_13 = arith.constant 0.000000e+00 : f32
    %43 = vector.broadcast %cst_13 : f32 to vector<8x1xf32>
    %44 = arith.select %42, %37, %43 : vector<8x1xi1>, vector<8x1xf32>
    %45 = vector.shape_cast %44 : vector<8x1xf32> to vector<1x8x1xf32>
    %cst_14 = arith.constant dense<0.000000e+00> : vector<1xf32>
    %46 = vector.multi_reduction <add>, %45, %cst_14 [1, 2] : vector<1x8x1xf32> to vector<1xf32>
    %47 = vector.shape_cast %46 : vector<1xf32> to vector<1x1x1xf32>
    %48 = vector.extract %47[0, 0, 0] : f32 from vector<1x1x1xf32>
    %49 = vector.broadcast %48 : f32 to vector<1x1xf32>
    %50 = arith.mulf %0, %0 : vector<8x128xf32>
    %51 = arith.mulf %1, %1 : vector<8x128xf32>
    %52 = arith.addf %50, %51 : vector<8x128xf32>
    %53 = vector.shape_cast %52 : vector<8x128xf32> to vector<1x8x128xf32>
    %cst_15 = arith.constant dense<0.000000e+00> : vector<1xf32>
    %54 = vector.multi_reduction <add>, %53, %cst_15 [1, 2] : vector<1x8x128xf32> to vector<1xf32>
    %55 = vector.shape_cast %54 : vector<1xf32> to vector<1x1x1xf32>
    %56 = vector.extract %55[0, 0, 0] : f32 from vector<1x1x1xf32>
    %57 = vector.broadcast %56 : f32 to vector<1x1xf32>
    %cst_16 = arith.constant 2.000000e-02 : f32
    %58 = vector.broadcast %cst_16 : f32 to vector<1x1xf32>
    %59 = arith.mulf %58, %57 : vector<1x1xf32>
    %60 = arith.addf %49, %59 : vector<1x1xf32>
    %cst_17 = arith.constant 2.500000e-01 : f32
    %61 = vector.broadcast %cst_17 : f32 to vector<1x1xf32>
    %62 = arith.mulf %60, %61 : vector<1x1xf32>
    %c0_i32 = arith.constant 0 : i32
    %63 = arith.cmpi eq, %arg0, %c0_i32 : i32
    %64 = arith.extui %63 : i1 to i32
    %c0_i32_18 = arith.constant 0 : i32
    %65 = arith.cmpi ne, %64, %c0_i32_18 : i32
    scf.if %65 {
      %cst_23 = arith.constant 0.000000e+00 : f32
      %69 = vector.broadcast %cst_23 : f32 to vector<1x1xf32>
      %c0_24 = arith.constant 0 : index
      %c0_25 = arith.constant 0 : index
      %70 = vector.load %arg4[%c0_24, %c0_25] : memref<1x1xf32, #tpu.memory_space<vmem>>, vector<1x1xf32>
      tpu.vector_store %arg4[%c0_24, %c0_25], %69 {strides = array<i32>} : memref<1x1xf32, #tpu.memory_space<vmem>>, vector<1x1xf32>,
    } else {
    }
    %c0_19 = arith.constant 0 : index
    %c0_20 = arith.constant 0 : index
    %66 = vector.load %arg4[%c0_19, %c0_20] : memref<1x1xf32, #tpu.memory_space<vmem>>, vector<1x1xf32>
    %67 = arith.addf %66, %62 : vector<1x1xf32>
    %c0_21 = arith.constant 0 : index
    %c0_22 = arith.constant 0 : index
    %68 = vector.load %arg4[%c0_21, %c0_22] : memref<1x1xf32, #tpu.memory_space<vmem>>, vector<1x1xf32>
    tpu.vector_store %arg4[%c0_21, %c0_22], %67 {strides = array<i32>} : memref<1x1xf32, #tpu.memory_space<vmem>>, vector<1x1xf32>,
    return
  }
  func.func @transform_0(%arg0: i32) -> (i32, i32) {
    %c0_i32 = arith.constant 0 : i32
    %c0_i32_0 = arith.constant 0 : i32
    return %arg0, %c0_i32 : i32, i32
  }
  func.func @transform_1(%arg0: i32) -> (i32, i32) {
    %c0_i32 = arith.constant 0 : i32
    %c0_i32_0 = arith.constant 0 : i32
    return %arg0, %c0_i32 : i32, i32
  }
  func.func @transform_2(%arg0: i32) -> (i32, i32) {
    %c0_i32 = arith.constant 0 : i32
    %c0_i32_0 = arith.constant 0 : i32
    %c0_i32_1 = arith.constant 0 : i32
    return %c0_i32, %c0_i32_0 : i32, i32
  }
  func.func @transform_3(%arg0: i32) -> (i32, i32) {
    %c0_i32 = arith.constant 0 : i32
    %c0_i32_0 = arith.constant 0 : i32
    %c0_i32_1 = arith.constant 0 : i32
    return %c0_i32, %c0_i32_0 : i32, i32
  }
}

</mosaic_0001>

<llo_original>
// kernel: tpu_custom_call.1
$region0: #{tpu_custom_call.1}
  #allocation0 [shape = 'u32[]', space=smem, size = 0x4, offset = 0x4, fixed_abs, tag = 'smem constant byte address 0x4 - core index']
  #allocation1 [shape = 'u32[144,128]{1,0:T(1,128)}', space=vmem, size = 0x12000, scoped, tag = 'internal scratch']
  %s0 = inlined_call_operand.hbm [shape: f32[8,128], index: 0, kind: input, shape index: {}]
  %s1 = inlined_call_operand.hbm [shape: f32[8,128], index: 1, kind: input, shape index: {}]
  %s2 = inlined_call_operand.hbm [shape: f32[8,128], index: 2, kind: input, shape index: {}]
  %s3 = inlined_call_operand.hbm [shape: f32[1,1], index: 3, kind: output, shape index: {}]
  %s4 = sld [smem:[#allocation0]]
  $region38: #{tpu_custom_call.1} parent=0
    _
  %s6 = ssub.s32 1, %s4
  %s7 = scalar_select 0, %s6, %s4
  $region1: #{tpu_custom_call.1} parent=0
    #allocation2 [shape = 'u8[4096]{0}', space=vmem, size = 0x1000, scoped, tag = 'input window, operand 0, single buffered']
    #allocation3 [shape = 's32[1]{0}', space=sflag, size = 0x4, scoped, tag = 'scoped memory for tpu_custom_call.1']
    #allocation4 [shape = 's32[1]{0}', space=sflag, size = 0x4, scoped, tag = 'scoped memory for tpu_custom_call.1']
    #allocation5 [shape = 'u8[4096]{0}', space=vmem, size = 0x1000, scoped, tag = 'input window, operand 1, single buffered']
    #allocation6 [shape = 's32[1]{0}', space=sflag, size = 0x4, scoped, tag = 'scoped memory for tpu_custom_call.1']
    #allocation7 [shape = 'u8[4096]{0}', space=vmem, size = 0x1000, scoped, tag = 'input window, operand 2, single buffered']
    #allocation8 [shape = 'u8[512]{0}', space=vmem, size = 0x400, scoped, tag = 'output window, operand 0, single buffered']
    %8 = vsyncpa [#allocation3], 0
    %9 = vsyncpa [#allocation6], 0
    %10 = vsyncpa [#allocation4], 0
    // Predicated region
    $region2: #{tpu_custom_call.1} parent=1 // pred_check
      _
    $region3: #{tpu_custom_call.1} parent=1 // pred_check_branch
      %12 = sbr.rel (0) target = $region5
    $region4: #{tpu_custom_call.1} parent=1 // pred_region
      %s14 = ssub.s32 128, 128
      %15 = vsyncadd [#allocation3], %s14
      %s17 = sshll.u32 [#allocation2], 4
      %s18 = int_to_ptr.vmem [resolvable:$true] %s17
      %20 = dma.hbm_to_vmem [thread:$0]  %s0, 128, %s18, [#allocation3]
    $region5: #{tpu_custom_call.1} parent=1 // pred_fallthru
      _
    // Predicated region
    $region6: #{tpu_custom_call.1} parent=1 // pred_check
      _
    $region7: #{tpu_custom_call.1} parent=1 // pred_check_branch
      %22 = sbr.rel (0) target = $region9
    $region8: #{tpu_custom_call.1} parent=1 // pred_region
      %s24 = ssub.s32 128, 128
      %25 = vsyncadd [#allocation6], %s24
      %s27 = sshll.u32 [#allocation5], 4
      %s28 = int_to_ptr.vmem [resolvable:$true] %s27
      %30 = dma.hbm_to_vmem [thread:$0]  %s1, 128, %s28, [#allocation6]
    $region9: #{tpu_custom_call.1} parent=1 // pred_fallthru
      _
    // Predicated region
    $region10: #{tpu_custom_call.1} parent=1 // pred_check
      _
    $region11: #{tpu_custom_call.1} parent=1 // pred_check_branch
      %32 = sbr.rel (0) target = $region13
    $region12: #{tpu_custom_call.1} parent=1 // pred_region
      %s34 = ssub.s32 128, 128
      %35 = vsyncadd [#allocation6], %s34
      %s37 = sshll.u32 [#allocation7], 4
      %s38 = int_to_ptr.vmem [resolvable:$true] %s37
      %40 = dma.hbm_to_vmem [thread:$0]  %s2, 128, %s38, [#allocation6]
    $region13: #{tpu_custom_call.1} parent=1 // pred_fallthru
      _
    // Predicated region
    $region14: #{tpu_custom_call.1} parent=1 // pred_check
      _
    $region15: #{tpu_custom_call.1} parent=1 // pred_check_branch
      %42 = sbr.rel (0) target = $region17
    $region16: #{tpu_custom_call.1} parent=1 // pred_region
      %43 = dma.done [#allocation3], 128
    $region17: #{tpu_custom_call.1} parent=1 // pred_fallthru
      _
    // Predicated region
    $region18: #{tpu_custom_call.1} parent=1 // pred_check
      _
    $region19: #{tpu_custom_call.1} parent=1 // pred_check_branch
      %45 = sbr.rel (0) target = $region21
    $region20: #{tpu_custom_call.1} parent=1 // pred_region
      %46 = dma.done [#allocation6], 128
    $region21: #{tpu_custom_call.1} parent=1 // pred_fallthru
      _
    // Predicated region
    $region22: #{tpu_custom_call.1} parent=1 // pred_check
      _
    $region23: #{tpu_custom_call.1} parent=1 // pred_check_branch
      %48 = sbr.rel (0) target = $region25
    $region24: #{tpu_custom_call.1} parent=1 // pred_region
      %49 = dma.done [#allocation6], 128
    $region25: #{tpu_custom_call.1} parent=1 // pred_fallthru
      _
    %v50 = vld [vmem:[#allocation2] sm:$0xff]
    %v51 = vld [vmem:[#allocation5] sm:$0xff]
    %v52 = vld [vmem:[#allocation7] sm:$0xff]
    %s53 = smul.u32 0, 8
    %v54 = vadd.f32 %v50, %v51
    %55 = vmatprep.subr.mxu0 0.0
    %56 = vmatpush1.xpose.msra.mxu0 0.0
    %57 = vmatprep.subr.mxu0 0.0
    %58 = vmatpush1.xpose.msra.mxu0 0.0
    %59 = vmatprep.subr.mxu0 0.0
    %60 = vmatpush1.xpose.msra.mxu0 0.0
    %61 = vmatprep.subr.mxu0 0.0
    %62 = vmatpush1.xpose.msra.mxu0 0.0
    %63 = vmatprep.subr.mxu0 0.0
    %64 = vmatpush1.xpose.msra.mxu0 0.0
    %65 = vmatprep.subr.mxu0 0.0
    %66 = vmatpush1.xpose.msra.mxu0 0.0
    %67 = vmatprep.subr.mxu0 0.0
    %68 = vmatpush1.xpose.msra.mxu0 0.0
    %69 = vmatprep.subr.mxu0 0.0
    %70 = vmatpush1.xpose.msra.mxu0 0.0
    %71 = vmatprep.subr.mxu0 0.0
    %72 = vmatpush1.xpose.msra.mxu0 0.0
    %73 = vmatprep.subr.mxu0 0.0
    %74 = vmatpush1.xpose.msra.mxu0 0.0
    %75 = vmatprep.subr.mxu0 0.0
    %76 = vmatpush1.xpose.msra.mxu0 0.0
    %77 = vmatprep.subr.mxu0 0.0
    %78 = vmatpush1.xpose.msra.mxu0 0.0
    %79 = vmatprep.subr.mxu0 0.0
    %80 = vmatpush1.xpose.msra.mxu0 0.0
    %81 = vmatprep.subr.mxu0 0.0
    %82 = vmatpush1.xpose.msra.mxu0 0.0
    %83 = vmatprep.subr.mxu0 0.0
    %84 = vmatpush1.xpose.msra.mxu0 0.0
    %85 = vmatprep.subr.mxu0 0.0
    %86 = vmatpush1.xpose.msra.mxu0 %v52
    %87 = vmatprep.subr.mxu0 0.0
    %88 = vmatpush2.xpose.msra.mxu0 0.0
    %89 = vmatprep.subr.mxu0 0.0
    %90 = vmatpush2.xpose.msra.mxu0 0.0
    %91 = vmatprep.subr.mxu0 0.0
    %92 = vmatpush2.xpose.msra.mxu0 0.0
    %93 = vmatprep.subr.mxu0 0.0
    %94 = vmatpush2.xpose.msra.mxu0 0.0
    %95 = vmatprep.subr.mxu0 0.0
    %96 = vmatpush2.xpose.msra.mxu0 0.0
    %97 = vmatprep.subr.mxu0 0.0
    %98 = vmatpush2.xpose.msra.mxu0 0.0
    %99 = vmatprep.subr.mxu0 0.0
    %100 = vmatpush2.xpose.msra.mxu0 0.0
    %101 = vmatprep.subr.mxu0 0.0
    %102 = vmatpush2.xpose.msra.mxu0 0.0
    %103 = vmatprep.subr.mxu0 0.0
    %104 = vmatpush2.xpose.msra.mxu0 0.0
    %105 = vmatprep.subr.mxu0 0.0
    %106 = vmatpush2.xpose.msra.mxu0 0.0
    %107 = vmatprep.subr.mxu0 0.0
    %108 = vmatpush2.xpose.msra.mxu0 0.0
    %109 = vmatprep.subr.mxu0 0.0
    %110 = vmatpush2.xpose.msra.mxu0 0.0
    %111 = vmatprep.subr.mxu0 0.0
    %112 = vmatpush2.xpose.msra.mxu0 0.0
    %113 = vmatprep.subr.mxu0 0.0
    %114 = vmatpush2.xpose.msra.mxu0 0.0
    %115 = vmatprep.subr.mxu0 0.0
    %116 = vmatpush2.xpose.msra.mxu0 0.0
    %117 = vmatprep.subr.mxu0 0.0
    %118 = vmatpush2.xpose.msra.mxu0 0.0
    %119 = vmatprep.mubr.f32.mxu0 0.0
    %120 = vmatmul.mubr.f32.gmra.mxu0 %v54
    %v121 = vpop.f32.mrf.mxu0
    %v122 = vadd.f32 0.0, %v121
    %v123 = vpop.f32.mrf.mxu0
    %124 = vdwg.mxu0
    %v125 = vmul.f32 %v50, %v51
    %126 = vadd.xlane.f32.xlu0 %v125
    %v127 = vpop.xlane.xlu0 %126
    %v128 = vmul.f32 %v122, 4.0
    %v129 = vmul.f32 %v127, 4.0
    %v130 = vsub.f32 %v128, %v129
    %v131 = vlaneseq
    %v132 = vshrl.u32 %v131, 7
    %v133 = vstv %s53
    %v134 = vadd.s32 %v133, %v132
    %v135 = vlaneseq
    %v136 = vand.u32 %v135, 127
    %vm137 = vcmp.lt.s32.totalorder %v136, 4
    %vm138 = vcmp.ne.s32.totalorder %v136, %v134
    %vm139 = vmand %vm137, %vm138
    %v140 = vsel %vm139, %v130, -1e+30
    %vm141 = vcmask 64512
    %v142 = vsel %vm141, %v140, -inf
    %143 = vmax.xlane.f32.xlu0 %v142
    %v144 = vpop.xlane.xlu0 %143
    %v145 = vsub.f32 %v140, %v144
    %v146 = vmul.f32 %v145, 1.442695
    %v147 = vpow.pop %v146
    %v148 = vsel %vm141, %v147, 0.0
    %149 = vadd.xlane.f32.xlu0 %v148
    %v150 = vpop.xlane.xlu0 %149
    %v151 = vsub.f32 0.0, %v144
    %v152 = vmul.f32 %v151, 1.442695
    %v153 = vpow.pop %v152
    %v154 = vadd.f32 %v153, %v150
    %v155 = vlog2.pop %v154
    %v156 = vmul.f32 %v155, 0.6931472
    %v157 = vadd.f32 %v144, %v156
    %vm158 = vcmp.lt.s32.totalorder %v134, 4
    %v159 = vsel %vm158, %v157, 0.0
    %vm160 = vcmask 7168
    %v161 = vsel %vm160, %v159, 0.0
    %162 = vadd.xlane.f32.xlu0 %v161
    %v163 = vpop.xlane.xlu0 %162
    %v164 = vrot.slane %v163, 4
    %v165 = vadd.f32 %v163, %v164
    %v166 = vrot.slane %v165, 2
    %v167 = vadd.f32 %v165, %v166
    %v168 = vrot.slane %v167, 1
    %v169 = vadd.f32 %v167, %v168
    %s170 = vtos %v169
    %v171 = vstv %s170
    %v172 = vmul.f32 %v50, %v50
    %v173 = vmul.f32 %v51, %v51
    %v174 = vadd.f32 %v172, %v173
    %175 = vadd.xlane.f32.xlu0 %v174
    %v176 = vpop.xlane.xlu0 %175
    %v177 = vrot.slane %v176, 4
    %v178 = vadd.f32 %v176, %v177
    %v179 = vrot.slane %v178, 2
    %v180 = vadd.f32 %v178, %v179
    %v181 = vrot.slane %v180, 1
    %v182 = vadd.f32 %v180, %v181
    %s183 = vtos %v182
    %v184 = vstv %s183
    %v185 = vmul.f32 %v184, 0.02
    %v186 = vadd.f32 %v171, %v185
    %v187 = vmul.f32 %v186, 0.25
    %p188 = scmp.eq.s32.totalorder 0, 0
    // Predicated region
    $region26: #{tpu_custom_call.1} parent=1 // pred_check
      %p189 = pneg %p188
    $region27: #{tpu_custom_call.1} parent=1 // pred_check_branch
      %191 = sbr.rel (%p189) target = $region29
    $region28: #{tpu_custom_call.1} parent=1 // pred_region
      %vm192 = vcmask 0
      %193 = vst.msk [vmem:[#allocation8] sm:$0x1] %vm192, 0.0
    $region29: #{tpu_custom_call.1} parent=1 // pred_fallthru
      _
    %v194 = vld [vmem:[#allocation8] sm:$0x1]
    %v195 = vadd.f32 %v194, %v187
    %vm196 = vcmask 0
    %197 = vst.msk [vmem:[#allocation8] sm:$0x1] %vm196, %v195
    // Predicated region
    $region30: #{tpu_custom_call.1} parent=1 // pred_check
      _
    $region31: #{tpu_custom_call.1} parent=1 // pred_check_branch
      %199 = sbr.rel (0) target = $region33
    $region32: #{tpu_custom_call.1} parent=1 // pred_region
      %s201 = ssub.s32 16, 16
      %202 = vsyncadd [#allocation4], %s201
      %s204 = sshll.u32 [#allocation8], 4
      %s205 = int_to_ptr.vmem [resolvable:$true] %s204
      %207 = dma.vmem_to_hbm [thread:$0]  %s205, 16, %s3, [#allocation4]
    $region33: #{tpu_custom_call.1} parent=1 // pred_fallthru
      _
    // Predicated region
    $region34: #{tpu_custom_call.1} parent=1 // pred_check
      _
    $region35: #{tpu_custom_call.1} parent=1 // pred_check_branch
      %209 = sbr.rel (0) target = $region37
    $region36: #{tpu_custom_call.1} parent=1 // pred_region
      %210 = dma.done [#allocation4], 16
    $region37: #{tpu_custom_call.1} parent=1 // pred_fallthru
      _
    %211 = vsyncpa [#allocation3], 1
    %212 = vsyncpa [#allocation6], 1
    %213 = vsyncpa [#allocation4], 1

</llo_original>
